<compile_context>
chip_gen: v5e
topology: v5e:2x2
jax: 0.10.0
libtpu: 0.0.40
codegen_flags: <defaults>
</compile_context>

<pallas_src>
import functools

import numpy as np
import jax
import jax.numpy as jnp
from jax.experimental import pallas as pl
from jax.experimental.pallas import tpu as pltpu


def _round_up(x, m):
    return (x + m - 1) // m * m


def _cdiv(a, b):
    return -(-a // b)


def _vae_encoder_kernel(x_ref, w_ref, b_ref, eps_ref,
                        samp_ref, ls_ref, kl_ref,
                        *, n, n_out, loc_off, scale_off, batch, block_b):
    i = pl.program_id(0)

    # One MXU sequence per grid step; halves sit at 128-aligned offsets when wide.
    h = jnp.dot(x_ref[...], w_ref[...], preferred_element_type=jnp.float32)
    h = h + b_ref[...]
    loc = h[:, loc_off:loc_off + n_out]
    raw_scale = h[:, scale_off:scale_off + n_out]
    scale = jax.nn.softplus(raw_scale) + 1e-8

    # Packed (loc | scale) output: one lane-dense store instead of two narrow ones.
    ls_ref[...] = jnp.concatenate([loc, scale], axis=-1)

    # Reparameterized samples in the flat [block_b, n*n_out] layout:
    # flat index k = s*n_out + j  ->  loc/scale tiled n times along lanes.
    if n > 1:
        loc_t = jnp.concatenate([loc] * n, axis=-1)
        scale_t = jnp.concatenate([scale] * n, axis=-1)
    else:
        loc_t, scale_t = loc, scale
    eps = eps_ref[...].astype(jnp.float32)       # math in f32 even for bf16 streams
    samp_ref[...] = (eps * scale_t + loc_t).astype(samp_ref.dtype)

    # KL(N(loc, scale) || N(0, 1)) per element, masked against the ragged last
    # batch block, reduced to a per-block partial (splat into this block's tile).
    kl = -jnp.log(scale) + 0.5 * (scale * scale + loc * loc - 1.0)
    row = i * block_b + jax.lax.broadcasted_iota(jnp.int32, (block_b, 1), 0)
    kl = jnp.where(row < batch, kl, 0.0)
    partial = jnp.sum(kl, keepdims=True)         # (1, 1)
    kl_ref[...] = jnp.broadcast_to(partial, kl_ref.shape)


def variational_encoder_layer(x, w, b, eps, *, block_b=None,
                              samples_dtype=jnp.float32):
    """x: [B, n_in], w: [n_in, 2*n_out], b: [2*n_out] or [1, 2*n_out],
    eps: [B, n, n_out] reparameterization noise (f32 or bf16 opt-in).

    Returns (samples [B, n, n_out], kl_loss scalar, loc [B, n_out], scale [B, n_out]).
    """
    x = jnp.asarray(x, jnp.float32)
    w = jnp.asarray(w, jnp.float32)
    b = jnp.asarray(b, jnp.float32).reshape(1, -1)
    eps = jnp.asarray(eps)                        # keep caller dtype (bf16 opt-in)

    B, n_in = x.shape
    two_n_out = w.shape[1]
    assert two_n_out % 2 == 0
    n_out = two_n_out // 2
    n = eps.shape[1]
    assert eps.shape == (B, n, n_out)
    nno = n * n_out

    # ---- weight packing: single matmul, 128-aligned halves when wide ----------
    if two_n_out <= 128:
        loc_off, scale_off, w_cols = 0, n_out, two_n_out
        w_cat, b_cat = w, b
    else:
        n128 = _round_up(n_out, 128)
        loc_off, scale_off, w_cols = 0, n128, 2 * n128
        w_cat = jnp.zeros((n_in, w_cols), jnp.float32)
        w_cat = w_cat.at[:, :n_out].set(w[:, :n_out])
        w_cat = w_cat.at[:, n128:n128 + n_out].set(w[:, n_out:])
        b_cat = jnp.zeros((1, w_cols), jnp.float32)
        b_cat = b_cat.at[:, :n_out].set(b[:, :n_out])
        b_cat = b_cat.at[:, n128:n128 + n_out].set(b[:, n_out:])

    # ---- lane-dense layout for the dominant stream (free row-major reshape) ---
    eps2 = eps.reshape(B, nno)

    # ---- batch tile from a per-generation VMEM budget --------------------------
    try:
        vmem_cap = int(pltpu.get_tpu_info().vmem_capacity_bytes)
    except Exception:
        vmem_cap = 64 * 1024 * 1024               # conservative (v7x per-TC VMEM)
    eps_isz = eps2.dtype.itemsize
    out_isz = np.dtype(samples_dtype).itemsize
    # double-buffered per-row footprint of the streamed tensors
    bytes_per_row = 2 * (4 * n_in + eps_isz * nno + out_isz * nno + 4 * 2 * n_out)
    stream_budget = vmem_cap // 3                 # headroom: weights, kl, scratch
    if block_b is None:
        block_b = min(stream_budget // max(bytes_per_row, 1), 2048)
    block_b = max(8, (int(block_b) // 8) * 8)     # sublane multiple
    block_b = min(block_b, _round_up(B, 8))
    grid_b = _cdiv(B, block_b)

    vmem_needed = (block_b * bytes_per_row
                   + 2 * 4 * (n_in * w_cols + w_cols)   # double-buffered w / b
                   + 2 * 4 * 8 * 128                    # kl partial blocks
                   + (2 << 20))                         # compiler scratch slack
    vmem_limit = int(min(max(vmem_needed, 16 << 20), vmem_cap - (4 << 20)))

    kernel = functools.partial(
        _vae_encoder_kernel, n=n, n_out=n_out,
        loc_off=loc_off, scale_off=scale_off, batch=B, block_b=block_b)

    rows = grid_b * block_b
    flops = 2 * rows * n_in * w_cols + 2 * rows * nno + 10 * rows * n_out
    bytes_accessed = (4 * x.size + 4 * w_cols * (n_in + 1)
                      + (eps_isz + out_isz) * B * nno
                      + 4 * B * 2 * n_out + 4 * grid_b * 8 * 128)

    samples2, locscale, kl_parts = pl.pallas_call(
        kernel,
        grid=(grid_b,),
        in_specs=[
            pl.BlockSpec((block_b, n_in), lambda i: (i, 0)),       # x   (streamed)
            pl.BlockSpec((n_in, w_cols), lambda i: (0, 0)),        # w   (resident)
            pl.BlockSpec((1, w_cols), lambda i: (0, 0)),           # b   (resident)
            # TODO(synk): if DMA is still exposed after the larger block_b, add
            # pipeline_mode=pl.Buffered(3) on this eps spec (trade VMEM on v7x).
            pl.BlockSpec((block_b, nno), lambda i: (i, 0)),        # eps (streamed)
        ],
        out_specs=(
            pl.BlockSpec((block_b, nno), lambda i: (i, 0)),        # samples
            pl.BlockSpec((block_b, 2 * n_out), lambda i: (i, 0)),  # loc|scale packed
            pl.BlockSpec((8, 128), lambda i: (i, 0)),              # per-block KL sum
        ),
        out_shape=(
            jax.ShapeDtypeStruct((B, nno), samples_dtype),
            jax.ShapeDtypeStruct((B, 2 * n_out), jnp.float32),
            jax.ShapeDtypeStruct((grid_b * 8, 128), jnp.float32),
        ),
        compiler_params=pltpu.CompilerParams(
            # Every output block is written exclusively by grid step i -> the
            # batch axis is safely parallel (megacore sharding on v7x).
            dimension_semantics=("parallel",),
            vmem_limit_bytes=vmem_limit,
        ),
        cost_estimate=pl.CostEstimate(
            flops=int(flops),
            transcendentals=int(3 * rows * n_out),
            bytes_accessed=int(bytes_accessed),
        ),
    )(x, w_cat, b_cat, eps2)

    samples = samples2.reshape(B, n, n_out)       # free: same row-major layout
    loc = locscale[:, :n_out]
    scale = locscale[:, n_out:]
    kl_loss = jnp.sum(kl_parts.reshape(grid_b, 8, 128)[:, 0, 0]) / B
    return samples, kl_loss, loc, scale


def _reference(x, w, b, eps):
    h = x @ w + b
    n_out = w.shape[1] // 2
    loc, raw_scale = h[:, :n_out], h[:, n_out:]
    scale = jax.nn.softplus(raw_scale) + 1e-8
    samples = loc[:, None, :] + eps * scale[:, None, :]
    kl = -jnp.log(scale) + 0.5 * (scale * scale + loc * loc - 1.0)
    return samples, jnp.mean(jnp.sum(kl, axis=-1)), loc, scale


if __name__ == "__main__":
    # Small shapes consistent with the module: batch=2, n_in=32, n_out=8, n=3 samples.
    B, n_in, n_out, n = 2, 32, 8, 3

    key = jax.random.PRNGKey(0)
    kx, kw, kb, ke, kx2, ke2 = jax.random.split(key, 6)

    # Deterministic parameter init (PyTorch nn.Linear-style uniform bounds).
    bound = 1.0 / jnp.sqrt(jnp.float32(n_in))
    w = jax.random.uniform(kw, (n_in, 2 * n_out), jnp.float32, -bound, bound)
    b = jax.random.uniform(kb, (1, 2 * n_out), jnp.float32, -bound, bound)

    x = jax.random.normal(kx, (B, n_in), jnp.float32)
    eps = jax.random.normal(ke, (B, n, n_out), jnp.float32)  # reparam noise

    samples, kl_loss, loc, scale = variational_encoder_layer(x, w, b, eps)
    jax.block_until_ready((samples, kl_loss, loc, scale))

    ref_s, ref_kl, ref_loc, ref_scale = _reference(x, w, b, eps)
    assert samples.shape == (B, n, n_out)
    assert jnp.allclose(samples, ref_s, atol=1e-5)
    assert jnp.allclose(kl_loss, ref_kl, atol=1e-5)
    assert jnp.allclose(loc, ref_loc, atol=1e-5)
    assert jnp.allclose(scale, ref_scale, atol=1e-5)

    # Multi-block grid with a ragged last block (no wrapper-side padding of eps).
    B2 = 20
    x2 = jax.random.normal(kx2, (B2, n_in), jnp.float32)
    eps2 = jax.random.normal(ke2, (B2, n, n_out), jnp.float32)
    s2, kl2, loc2, scale2 = variational_encoder_layer(x2, w, b, eps2, block_b=8)
    jax.block_until_ready((s2, kl2, loc2, scale2))
    r_s2, r_kl2, r_loc2, r_scale2 = _reference(x2, w, b, eps2)
    assert jnp.allclose(s2, r_s2, atol=1e-5)
    assert jnp.allclose(kl2, r_kl2, atol=1e-5)
    assert jnp.allclose(loc2, r_loc2, atol=1e-5)
    assert jnp.allclose(scale2, r_scale2, atol=1e-5)

    # bf16 opt-in on the bandwidth-dominant stream (eps read + samples write).
    eps_bf = eps2.astype(jnp.bfloat16)
    s3, kl3, loc3, scale3 = variational_encoder_layer(
        x2, w, b, eps_bf, block_b=8, samples_dtype=jnp.bfloat16)
    jax.block_until_ready((s3, kl3, loc3, scale3))
    r_s3, r_kl3, _, _ = _reference(x2, w, b, eps_bf.astype(jnp.float32))
    assert jnp.allclose(s3.astype(jnp.float32), r_s3, atol=3e-2, rtol=3e-2)
    assert jnp.allclose(kl3, r_kl3, atol=1e-5)
    assert jnp.allclose(loc3, r_loc2, atol=1e-5)

    print("KERNEL_OK")
</pallas_src>

<mosaic_0001>
module attributes {stable_mosaic.version = 11 : i64} {
  func.func @_vae_encoder_kernel(%arg0: i32, %arg1: memref<8x32xf32, #tpu.memory_space<vmem>>, %arg2: memref<32x16xf32, #tpu.memory_space<vmem>>, %arg3: memref<1x16xf32, #tpu.memory_space<vmem>>, %arg4: memref<8x24xf32, #tpu.memory_space<vmem>>, %arg5: memref<8x24xf32, #tpu.memory_space<vmem>>, %arg6: memref<8x16xf32, #tpu.memory_space<vmem>>, %arg7: memref<8x128xf32, #tpu.memory_space<vmem>>) attributes {dimension_semantics = [#tpu.dimension_semantics<parallel>], iteration_bounds = array<i64: 1>, scalar_prefetch = 0 : i64, scratch_operands = 0 : i64, tpu.core_type = #tpu.core_type<tc>, window_params = [{transform_indices = @transform_0, window_bounds = array<i64: 8, 32>}, {pipeline_mode = #tpu.pipeline_mode<synchronous>, transform_indices = @transform_1, window_bounds = array<i64: 32, 16>}, {pipeline_mode = #tpu.pipeline_mode<synchronous>, transform_indices = @transform_2, window_bounds = array<i64: 1, 16>}, {transform_indices = @transform_3, window_bounds = array<i64: 8, 24>}, {transform_indices = @transform_4, window_bounds = array<i64: 8, 24>}, {transform_indices = @transform_5, window_bounds = array<i64: 8, 16>}, {transform_indices = @transform_6, window_bounds = array<i64: 8, 128>}]} {
    %c0 = arith.constant 0 : index
    %c0_0 = arith.constant 0 : index
    %0 = vector.load %arg1[%c0, %c0_0] : memref<8x32xf32, #tpu.memory_space<vmem>>, vector<8x32xf32>
    %c0_1 = arith.constant 0 : index
    %c0_2 = arith.constant 0 : index
    %1 = vector.load %arg2[%c0_1, %c0_2] : memref<32x16xf32, #tpu.memory_space<vmem>>, vector<32x16xf32>
    %cst = arith.constant dense<0.000000e+00> : vector<8x16xf32>
    %2 = tpu.matmul %0, %1, %cst {dimension_numbers = #tpu.dot_dimension_numbers<[1], [0], [0], [1], [0, 0, 1, 1], [], []>} : vector<8x32xf32>, vector<32x16xf32>, vector<8x16xf32> -> vector<8x16xf32>
    %c0_3 = arith.constant 0 : index
    %c0_4 = arith.constant 0 : index
    %3 = vector.load %arg3[%c0_3, %c0_4] : memref<1x16xf32, #tpu.memory_space<vmem>>, vector<1x16xf32>
    %4 = vector.broadcast %3 : vector<1x16xf32> to vector<8x16xf32>
    %5 = arith.addf %2, %4 : vector<8x16xf32>
    %6 = vector.extract_strided_slice %5 {offsets = [0, 0], sizes = [8, 8], strides = [1, 1]} : vector<8x16xf32> to vector<8x8xf32>
    %7 = vector.extract_strided_slice %5 {offsets = [0, 8], sizes = [8, 8], strides = [1, 1]} : vector<8x16xf32> to vector<8x8xf32>
    %cst_5 = arith.constant 0.000000e+00 : f32
    %8 = vector.broadcast %cst_5 : f32 to vector<8x8xf32>
    %9 = arith.maximumf %7, %8 : vector<8x8xf32>
    %10 = vector.broadcast %cst_5 : f32 to vector<8x8xf32>
    %11 = arith.subf %7, %10 : vector<8x8xf32>
    %12 = arith.cmpf one, %11, %11 : vector<8x8xf32>
    %13 = vector.broadcast %cst_5 : f32 to vector<8x8xf32>
    %14 = arith.addf %7, %13 : vector<8x8xf32>
    %15 = math.absf %11 : vector<8x8xf32>
    %cst_6 = arith.constant 0.000000e+00 : f32
    %16 = vector.broadcast %cst_6 : f32 to vector<8x8xf32>
    %17 = arith.subf %16, %15 : vector<8x8xf32>
    %18 = math.exp %17 : vector<8x8xf32>
    %19 = math.log1p %18 : vector<8x8xf32>
    %20 = arith.addf %9, %19 : vector<8x8xf32>
    %21 = arith.select %12, %14, %20 : vector<8x8xi1>, vector<8x8xf32>
    %cst_7 = arith.constant 9.99999993E-9 : f32
    %22 = vector.broadcast %cst_7 : f32 to vector<8x8xf32>
    %23 = arith.addf %21, %22 : vector<8x8xf32>
    %24 = tpu.concatenate %6, %23 in 1 : vector<8x8xf32>, vector<8x8xf32> -> vector<8x16xf32>
    %c0_8 = arith.constant 0 : index
    %c0_9 = arith.constant 0 : index
    %25 = vector.load %arg6[%c0_8, %c0_9] : memref<8x16xf32, #tpu.memory_space<vmem>>, vector<8x16xf32>
    tpu.vector_store %arg6[%c0_8, %c0_9], %24 {strides = array<i32>} : memref<8x16xf32, #tpu.memory_space<vmem>>, vector<8x16xf32>,
    %26 = tpu.concatenate %6, %6, %6 in 1 : vector<8x8xf32>, vector<8x8xf32>, vector<8x8xf32> -> vector<8x24xf32>
    %27 = tpu.concatenate %23, %23, %23 in 1 : vector<8x8xf32>, vector<8x8xf32>, vector<8x8xf32> -> vector<8x24xf32>
    %c0_10 = arith.constant 0 : index
    %c0_11 = arith.constant 0 : index
    %28 = vector.load %arg4[%c0_10, %c0_11] : memref<8x24xf32, #tpu.memory_space<vmem>>, vector<8x24xf32>
    %29 = arith.mulf %28, %27 : vector<8x24xf32>
    %30 = arith.addf %29, %26 : vector<8x24xf32>
    %c0_12 = arith.constant 0 : index
    %c0_13 = arith.constant 0 : index
    %31 = vector.load %arg5[%c0_12, %c0_13] : memref<8x24xf32, #tpu.memory_space<vmem>>, vector<8x24xf32>
    tpu.vector_store %arg5[%c0_12, %c0_13], %30 {strides = array<i32>} : memref<8x24xf32, #tpu.memory_space<vmem>>, vector<8x24xf32>,
    %32 = math.log %23 : vector<8x8xf32>
    %cst_14 = arith.constant 0.000000e+00 : f32
    %33 = vector.broadcast %cst_14 : f32 to vector<8x8xf32>
    %34 = arith.subf %33, %32 : vector<8x8xf32>
    %35 = arith.mulf %23, %23 : vector<8x8xf32>
    %36 = arith.mulf %6, %6 : vector<8x8xf32>
    %37 = arith.addf %35, %36 : vector<8x8xf32>
    %cst_15 = arith.constant 1.000000e+00 : f32
    %38 = vector.broadcast %cst_15 : f32 to vector<8x8xf32>
    %39 = arith.subf %37, %38 : vector<8x8xf32>
    %cst_16 = arith.constant 5.000000e-01 : f32
    %40 = vector.broadcast %cst_16 : f32 to vector<8x8xf32>
    %41 = arith.mulf %40, %39 : vector<8x8xf32>
    %42 = arith.addf %34, %41 : vector<8x8xf32>
    %c8_i32 = arith.constant 8 : i32
    %43 = arith.muli %arg0, %c8_i32 : i32
    %44 = tpu.iota {dimensions = array<i32: 0>} : vector<8x1xi32>
    %45 = vector.broadcast %43 : i32 to vector<8x1xi32>
    %46 = arith.addi %45, %44 : vector<8x1xi32>
    %c2_i32 = arith.constant 2 : i32
    %47 = vector.broadcast %c2_i32 : i32 to vector<8x1xi32>
    %48 = arith.cmpi slt, %46, %47 : vector<8x1xi32>
    %cst_17 = arith.constant 0.000000e+00 : f32
    %49 = vector.shape_cast %48 : vector<8x1xi1> to vector<8x1xi1>
    %50 = vector.broadcast %49 : vector<8x1xi1> to vector<8x8xi1>
    %51 = vector.broadcast %cst_17 : f32 to vector<8x8xf32>
    %52 = arith.select %50, %42, %51 : vector<8x8xi1>, vector<8x8xf32>
    %53 = vector.shape_cast %52 : vector<8x8xf32> to vector<1x8x8xf32>
    %cst_18 = arith.constant dense<0.000000e+00> : vector<1xf32>
    %54 = vector.multi_reduction <add>, %53, %cst_18 [1, 2] : vector<1x8x8xf32> to vector<1xf32>
    %55 = vector.shape_cast %54 : vector<1xf32> to vector<1x1x1xf32>
    %56 = vector.extract %55[0, 0, 0] : f32 from vector<1x1x1xf32>
    %57 = vector.broadcast %56 : f32 to vector<1x1xf32>
    %58 = vector.shape_cast %57 : vector<1x1xf32> to vector<1x1xf32>
    %59 = vector.broadcast %58 : vector<1x1xf32> to vector<8x128xf32>
    %c0_19 = arith.constant 0 : index
    %c0_20 = arith.constant 0 : index
    %60 = vector.load %arg7[%c0_19, %c0_20] : memref<8x128xf32, #tpu.memory_space<vmem>>, vector<8x128xf32>
    tpu.vector_store %arg7[%c0_19, %c0_20], %59 {strides = array<i32>} : memref<8x128xf32, #tpu.memory_space<vmem>>, vector<8x128xf32>,
    return
  }
  func.func @transform_0(%arg0: i32) -> (i32, i32) {
    %c0_i32 = arith.constant 0 : i32
    %c0_i32_0 = arith.constant 0 : i32
    return %arg0, %c0_i32 : i32, i32
  }
  func.func @transform_1(%arg0: i32) -> (i32, i32) {
    %c0_i32 = arith.constant 0 : i32
    %c0_i32_0 = arith.constant 0 : i32
    %c0_i32_1 = arith.constant 0 : i32
    return %c0_i32, %c0_i32_0 : i32, i32
  }
  func.func @transform_2(%arg0: i32) -> (i32, i32) {
    %c0_i32 = arith.constant 0 : i32
    %c0_i32_0 = arith.constant 0 : i32
    %c0_i32_1 = arith.constant 0 : i32
    return %c0_i32, %c0_i32_0 : i32, i32
  }
  func.func @transform_3(%arg0: i32) -> (i32, i32) {
    %c0_i32 = arith.constant 0 : i32
    %c0_i32_0 = arith.constant 0 : i32
    return %arg0, %c0_i32 : i32, i32
  }
  func.func @transform_4(%arg0: i32) -> (i32, i32) {
    %c0_i32 = arith.constant 0 : i32
    %c0_i32_0 = arith.constant 0 : i32
    return %arg0, %c0_i32 : i32, i32
  }
  func.func @transform_5(%arg0: i32) -> (i32, i32) {
    %c0_i32 = arith.constant 0 : i32
    %c0_i32_0 = arith.constant 0 : i32
    return %arg0, %c0_i32 : i32, i32
  }
  func.func @transform_6(%arg0: i32) -> (i32, i32) {
    %c0_i32 = arith.constant 0 : i32
    %c0_i32_0 = arith.constant 0 : i32
    return %arg0, %c0_i32 : i32, i32
  }
}

</mosaic_0001>

<llo_original>
// kernel: tpu_custom_call.1
$region0: #{tpu_custom_call.1}
  #allocation0 [shape = 'u32[]', space=smem, size = 0x4, offset = 0x4, fixed_abs, tag = 'smem constant byte address 0x4 - core index']
  #allocation1 [shape = 'u32[72,128]{1,0:T(1,128)}', space=vmem, size = 0x9000, scoped, tag = 'internal scratch']
  %s0 = inlined_call_operand.vmem [shape: f32[2,32], index: 0, kind: input, shape index: {}]
  %s1 = inlined_call_operand.vmem [shape: f32[32,16], index: 1, kind: input, shape index: {}]
  %s2 = inlined_call_operand.vmem [shape: f32[1,16], index: 2, kind: input, shape index: {}]
  %s3 = inlined_call_operand.vmem [shape: f32[2,24], index: 3, kind: input, shape index: {}]
  %s4 = inlined_call_operand.hbm [shape: f32[2,24], index: 4, kind: output, shape index: {0}]
  %s5 = inlined_call_operand.hbm [shape: f32[2,16], index: 5, kind: output, shape index: {1}]
  %s6 = inlined_call_operand.hbm [shape: f32[8,128], index: 6, kind: output, shape index: {2}]
  %7 = xla_tuple %s4, %s5, %s6
  %s8 = sld [smem:[#allocation0]]
  $region42: #{tpu_custom_call.1} parent=0
    _
  %s10 = ssub.s32 1, %s8
  %s11 = scalar_select 0, %s10, %s8
  $region1: #{tpu_custom_call.1} parent=0
    #allocation2 [shape = 'u8[4096]{0}', space=vmem, size = 0x1000, scoped, tag = 'output window, operand 0, single buffered']
    #allocation3 [shape = 's32[1]{0}', space=sflag, size = 0x4, scoped, tag = 'scoped memory for tpu_custom_call.1']
    #allocation4 [shape = 'u8[4096]{0}', space=vmem, size = 0x1000, scoped, tag = 'output window, operand 1, single buffered']
    #allocation5 [shape = 's32[1]{0}', space=sflag, size = 0x4, scoped, tag = 'scoped memory for tpu_custom_call.1']
    #allocation6 [shape = 'u8[4096]{0}', space=vmem, size = 0x1000, scoped, tag = 'output window, operand 2, single buffered']
    %12 = vsyncpa [#allocation3], 0
    %13 = vsyncpa [#allocation5], 0
    // Predicated region
    $region2: #{tpu_custom_call.1} parent=1 // pred_check
      _
    $region3: #{tpu_custom_call.1} parent=1 // pred_check_branch
      %15 = sbr.rel (0) target = $region5
    $region4: #{tpu_custom_call.1} parent=1 // pred_region
      _
    $region5: #{tpu_custom_call.1} parent=1 // pred_fallthru
      _
    // Predicated region
    $region6: #{tpu_custom_call.1} parent=1 // pred_check
      _
    $region7: #{tpu_custom_call.1} parent=1 // pred_check_branch
      %17 = sbr.rel (0) target = $region9
    $region8: #{tpu_custom_call.1} parent=1 // pred_region
      _
    $region9: #{tpu_custom_call.1} parent=1 // pred_fallthru
      _
    // Predicated region
    $region10: #{tpu_custom_call.1} parent=1 // pred_check
      _
    $region11: #{tpu_custom_call.1} parent=1 // pred_check_branch
      %19 = sbr.rel (0) target = $region13
    $region12: #{tpu_custom_call.1} parent=1 // pred_region
      _
    $region13: #{tpu_custom_call.1} parent=1 // pred_fallthru
      _
    // Predicated region
    $region14: #{tpu_custom_call.1} parent=1 // pred_check
      _
    $region15: #{tpu_custom_call.1} parent=1 // pred_check_branch
      %21 = sbr.rel (0) target = $region17
    $region16: #{tpu_custom_call.1} parent=1 // pred_region
      _
    $region17: #{tpu_custom_call.1} parent=1 // pred_fallthru
      _
    %v22 = vld [vmem:[%s0] sm:$0xff]
    %v23 = vld [vmem:[%s1] sm:$0xff]
    %v24 = vld [vmem:[%s1 + $0x8] sm:$0xff]
    %v25 = vld [vmem:[%s1 + $0x10] sm:$0xff]
    %v26 = vld [vmem:[%s1 + $0x18] sm:$0xff]
    %v27 = vld [vmem:[%s2] sm:$0x1]
    %v29 = vperm.slane %v27, 0
    %vm31 = vcmask 261120
    %v33 = vsel %vm31, %v22, 0
    %35 = vmatpush.msra.mxu0 0.0
    %36 = vmatpush.msra.mxu0 0.0
    %37 = vmatpush.msra.mxu0 0.0
    %38 = vmatpush.msra.mxu0 0.0
    %39 = vmatpush.msra.mxu0 0.0
    %40 = vmatpush.msra.mxu0 0.0
    %41 = vmatpush.msra.mxu0 0.0
    %42 = vmatpush.msra.mxu0 0.0
    %43 = vmatpush.msra.mxu0 0.0
    %44 = vmatpush.msra.mxu0 0.0
    %45 = vmatpush.msra.mxu0 0.0
    %46 = vmatpush.msra.mxu0 0.0
    %47 = vmatpush.msra.mxu0 %v26
    %48 = vmatpush.msra.mxu0 %v25
    %49 = vmatpush.msra.mxu0 %v24
    %50 = vmatpush.msra.mxu0 %v23
    %51 = vmatmul.f32.gmra.mxu0 %v33
    %v52 = vpop.f32.mrf.mxu0
    %v53 = vadd.f32 %v29, %v52
    %54 = vdwg.mxu0
    %v55 = vmax.f32 %v53, 0.0
    %vm56 = vcmp.ne.f32.partialorder %v53, %v53
    %v57 = vadd.f32 %v53, 0.0
    %v58 = vand.u32 2147483647, %v53
    %v59 = vsub.f32 0.0, %v58
    %v60 = vmul.f32 %v59, 1.442695
    %v61 = vpow.pop %v60
    %v62 = vadd.f32 %v61, 1.0
    %v63 = vlog2.pop %v62
    %v64 = vmul.f32 %v63, 0.6931472
    %v65 = vmul.f32 -0.5, %v61
    %v66 = vadd.f32 %v65, 1.0
    %v67 = vmul.f32 %v66, %v61
    %v68 = vand.u32 2147483647, %v61
    %vm69 = vcmp.lt.f32.partialorder %v68, 0.0004427343
    %v70 = vsel %vm69, %v67, %v64
    %v71 = vadd.f32 %v55, %v70
    %v72 = vsel %vm56, %v57, %v71
    %v73 = vadd.f32 %v72, 1e-08
    %vm74 = vcmask 64512
    %v75 = vsel %vm74, %v53, %v73
    %vm76 = vcmask 130048
    %77 = vst.msk [vmem:[#allocation4] sm:$0xff] %vm76, %v75
    %79 = vrot.lane.b32.xlu0 %v53, 8
    %v80 = vpop.permute.xlu0 %79
    %82 = vrot.lane.b32.xlu0 %v53, 16
    %v83 = vpop.permute.xlu0 %82
    %v85 = vsel %vm74, %v53, %v80
    %v86 = vsel %vm76, %v85, %v83
    %88 = vrot.lane.b32.xlu0 %v73, 120
    %v89 = vpop.permute.xlu0 %88
    %91 = vrot.lane.b32.xlu0 %v73, 8
    %v92 = vpop.permute.xlu0 %91
    %v94 = vsel %vm74, %v89, %v73
    %v95 = vsel %vm76, %v94, %v92
    %v96 = vld [vmem:[%s3] sm:$0xff]
    %v97 = vmul.f32 %v96, %v95
    %v98 = vadd.f32 %v97, %v86
    %vm99 = vcmask 195584
    %100 = vst.msk [vmem:[#allocation2] sm:$0xff] %vm99, %v98
    %v101 = vlog2.pop %v73
    %v102 = vmul.f32 %v101, 0.6931472
    %v103 = vsub.f32 0.0, %v102
    %v104 = vmul.f32 %v73, %v73
    %v105 = vmul.f32 %v53, %v53
    %107 = vrot.lane.b32.xlu0 %v105, 8
    %v108 = vpop.permute.xlu0 %107
    %v110 = vadd.f32 %v104, %v108
    %v111 = vsub.f32 %v110, 1.0
    %v112 = vmul.f32 %v111, 0.5
    %v113 = vadd.f32 %v103, %v112
    %s114 = smul.u32 0, 8
    %v115 = vlaneseq
    %v116 = vshrl.u32 %v115, 7
    %v117 = vstv %s114
    %v118 = vadd.s32 %v117, %v116
    %vm119 = vcmp.lt.s32.totalorder %v118, 2
    %v120 = vsel %vm119, 1, 0
    %vm121 = vcmp.eq.s32.totalorder %v120, 1
    %v122 = vsel %vm121, %v113, 0.0
    %124 = vrot.lane.b32.xlu0 %v122, 120
    %v125 = vpop.permute.xlu0 %124
    %v127 = vsel %vm74, %v125, 0.0
    %128 = vadd.xlane.f32.xlu0 %v127
    %v129 = vpop.xlane.xlu0 %128
    %v130 = vrot.slane %v129, 4
    %v131 = vadd.f32 %v129, %v130
    %v132 = vrot.slane %v131, 2
    %v133 = vadd.f32 %v131, %v132
    %v134 = vrot.slane %v133, 1
    %v135 = vadd.f32 %v133, %v134
    %s136 = vtos %v135
    %v137 = vstv %s136
    %138 = vst [vmem:[#allocation6] sm:$0xff] %v137
    // Predicated region
    $region18: #{tpu_custom_call.1} parent=1 // pred_check
      _
    $region19: #{tpu_custom_call.1} parent=1 // pred_check_branch
      %140 = sbr.rel (0) target = $region21
    $region20: #{tpu_custom_call.1} parent=1 // pred_region
      %142 = vsyncadd [#allocation3], 96
      %s143 = sshll.u32 [#allocation2], 4
      %s144 = int_to_ptr.vmem [resolvable:$true] %s143
      %s145 = sshll.u32 %s4, 4
      %s146 = int_to_ptr.hbm [resolvable:$true] %s145
      %151 = dma.vmem_to_hbm [thread:$0]  %s144, 32, %s146, [#allocation3], 32, 32, 2
    $region21: #{tpu_custom_call.1} parent=1 // pred_fallthru
      _
    // Predicated region
    $region22: #{tpu_custom_call.1} parent=1 // pred_check
      _
    $region23: #{tpu_custom_call.1} parent=1 // pred_check_branch
      %153 = sbr.rel (0) target = $region25
    $region24: #{tpu_custom_call.1} parent=1 // pred_region
      %155 = vsyncadd [#allocation5], 96
      %s156 = sshll.u32 [#allocation4], 4
      %s157 = int_to_ptr.vmem [resolvable:$true] %s156
      %s158 = sshll.u32 %s5, 4
      %s159 = int_to_ptr.hbm [resolvable:$true] %s158
      %164 = dma.vmem_to_hbm [thread:$0]  %s157, 32, %s159, [#allocation5], 32, 32, 2
    $region25: #{tpu_custom_call.1} parent=1 // pred_fallthru
      _
    // Predicated region
    $region26: #{tpu_custom_call.1} parent=1 // pred_check
      _
    $region27: #{tpu_custom_call.1} parent=1 // pred_check_branch
      %166 = sbr.rel (0) target = $region29
    $region28: #{tpu_custom_call.1} parent=1 // pred_region
      %168 = vsyncadd [#allocation5], 0
      %s170 = sshll.u32 [#allocation6], 4
      %s171 = int_to_ptr.vmem [resolvable:$true] %s170
      %s172 = sshll.u32 %s6, 4
      %s173 = int_to_ptr.hbm [resolvable:$true] %s172
      %175 = dma.vmem_to_hbm [thread:$0]  %s171, 128, %s173, [#allocation5]
    $region29: #{tpu_custom_call.1} parent=1 // pred_fallthru
      _
    // Predicated region
    $region30: #{tpu_custom_call.1} parent=1 // pred_check
      _
    $region31: #{tpu_custom_call.1} parent=1 // pred_check_branch
      %177 = sbr.rel (0) target = $region33
    $region32: #{tpu_custom_call.1} parent=1 // pred_region
      %179 = dma.done [#allocation3], 128
    $region33: #{tpu_custom_call.1} parent=1 // pred_fallthru
      _
    // Predicated region
    $region34: #{tpu_custom_call.1} parent=1 // pred_check
      _
    $region35: #{tpu_custom_call.1} parent=1 // pred_check_branch
      %181 = sbr.rel (0) target = $region37
    $region36: #{tpu_custom_call.1} parent=1 // pred_region
      %183 = dma.done [#allocation5], 128
    $region37: #{tpu_custom_call.1} parent=1 // pred_fallthru
      _
    // Predicated region
    $region38: #{tpu_custom_call.1} parent=1 // pred_check
      _
    $region39: #{tpu_custom_call.1} parent=1 // pred_check_branch
      %185 = sbr.rel (0) target = $region41
    $region40: #{tpu_custom_call.1} parent=1 // pred_region
      %187 = dma.done [#allocation5], 128
    $region41: #{tpu_custom_call.1} parent=1 // pred_fallthru
      _
    %188 = vsyncpa [#allocation3], 1
    %189 = vsyncpa [#allocation5], 1

</llo_original>
